<compile_context>
chip_gen: v5e
topology: v5e:2x2
jax: 0.10.0
libtpu: 0.0.40
codegen_flags: <defaults>
</compile_context>

<pallas_src>
import functools

import jax
import jax.numpy as jnp
from jax.experimental import pallas as pl
from jax.experimental.pallas import tpu as pltpu


_VMEM_LIMIT = 48 * 1024 * 1024   # safe on v5e/v6e (128 MiB) and v7x (64 MiB/TC)
_FUSED_MAX_NODES = 512           # whole forward fits comfortably in VMEM below this


def _round_up(x, m):
    return (x + m - 1) // m * m


def _pad2(x, rows, cols):
    return jnp.pad(x, ((0, rows - x.shape[0]), (0, cols - x.shape[1])))


# ---------------------------------------------------------------------------
# Kernels
# ---------------------------------------------------------------------------
def _fused_gcn_kernel(valid_cols, a_ref, x_ref, w1_ref, w2_ref, w3_ref,
                      b1_ref, b2_ref, b3_ref, o_ref):
    """Entire 3-layer GCN + masked log_softmax, everything resident in VMEM."""
    a = a_ref[...]

    # conv1: relu(A (X W1) + b1)
    xw = jnp.dot(x_ref[...], w1_ref[...], preferred_element_type=jnp.float32)
    h = jnp.dot(a, xw.astype(jnp.bfloat16), preferred_element_type=jnp.float32)
    h = jnp.maximum(h + b1_ref[...], 0.0).astype(jnp.bfloat16)

    # conv2: relu(A (H W2) + b2)
    hw = jnp.dot(h, w2_ref[...], preferred_element_type=jnp.float32)
    h = jnp.dot(a, hw.astype(jnp.bfloat16), preferred_element_type=jnp.float32)
    h = jnp.maximum(h + b2_ref[...], 0.0).astype(jnp.bfloat16)

    # dropout(p=0.5, training=False) is identity at inference.
    # conv3 + masked log_softmax over the real class lanes.
    hw = jnp.dot(h, w3_ref[...], preferred_element_type=jnp.float32)
    logits = jnp.dot(a, hw.astype(jnp.bfloat16),
                     preferred_element_type=jnp.float32) + b3_ref[...]
    cols = jax.lax.broadcasted_iota(jnp.int32, logits.shape, 1)
    logits = jnp.where(cols < valid_cols, logits, jnp.float32(-1e30))
    m = jnp.max(logits, axis=-1, keepdims=True)
    s = logits - m
    lse = jnp.log(jnp.sum(jnp.exp(s), axis=-1, keepdims=True))
    o_ref[...] = (s - lse).astype(o_ref.dtype)


def _transform_kernel(x_ref, w_ref, o_ref):
    """o = x @ w  (bf16 operands, f32 accumulation, bf16 output)."""
    o_ref[...] = jnp.dot(x_ref[...], w_ref[...],
                         preferred_element_type=jnp.float32).astype(o_ref.dtype)


def _aggregate_relu_transform_kernel(a_ref, h_ref, b_ref, w_ref, o_ref, acc_ref):
    """o = relu(A @ h + b) @ w_next, accumulated over the contraction grid axis."""
    k = pl.program_id(1)

    @pl.when(k == 0)
    def _():
        acc_ref[...] = jnp.zeros_like(acc_ref)

    acc_ref[...] += jnp.dot(a_ref[...], h_ref[...],
                            preferred_element_type=jnp.float32)

    @pl.when(k == pl.num_programs(1) - 1)
    def _():
        y = jnp.maximum(acc_ref[...] + b_ref[...], 0.0)
        o_ref[...] = jnp.dot(y.astype(w_ref.dtype), w_ref[...],
                             preferred_element_type=jnp.float32).astype(o_ref.dtype)


def _aggregate_logsoftmax_kernel(valid_cols, a_ref, h_ref, b_ref, o_ref, acc_ref):
    """o = log_softmax(A @ h + b) over the first `valid_cols` (unpadded) lanes."""
    k = pl.program_id(1)

    @pl.when(k == 0)
    def _():
        acc_ref[...] = jnp.zeros_like(acc_ref)

    acc_ref[...] += jnp.dot(a_ref[...], h_ref[...],
                            preferred_element_type=jnp.float32)

    @pl.when(k == pl.num_programs(1) - 1)
    def _():
        logits = acc_ref[...] + b_ref[...]
        cols = jax.lax.broadcasted_iota(jnp.int32, logits.shape, 1)
        logits = jnp.where(cols < valid_cols, logits, jnp.float32(-1e30))
        m = jnp.max(logits, axis=-1, keepdims=True)
        s = logits - m
        lse = jnp.log(jnp.sum(jnp.exp(s), axis=-1, keepdims=True))
        o_ref[...] = (s - lse).astype(o_ref.dtype)


# ---------------------------------------------------------------------------
# pallas_call wrappers
# ---------------------------------------------------------------------------
def _fused_forward(a_p, x_p, w1_p, w2_p, w3_p, b1_p, b2_p, b3_p, out_dim):
    n_p = a_p.shape[0]
    f_p = x_p.shape[1]
    h_p = w1_p.shape[1]
    c_p = w3_p.shape[1]
    return pl.pallas_call(
        functools.partial(_fused_gcn_kernel, out_dim),
        out_shape=jax.ShapeDtypeStruct((n_p, c_p), jnp.float32),
        grid_spec=pltpu.PrefetchScalarGridSpec(
            num_scalar_prefetch=0,
            grid=(1,),
            in_specs=[
                pl.BlockSpec((n_p, n_p), lambda i: (0, 0)),   # A_hat (resident)
                pl.BlockSpec((n_p, f_p), lambda i: (0, 0)),   # X
                pl.BlockSpec((f_p, h_p), lambda i: (0, 0)),   # W1
                pl.BlockSpec((h_p, h_p), lambda i: (0, 0)),   # W2
                pl.BlockSpec((h_p, c_p), lambda i: (0, 0)),   # W3
                pl.BlockSpec((1, h_p), lambda i: (0, 0)),     # b1
                pl.BlockSpec((1, h_p), lambda i: (0, 0)),     # b2
                pl.BlockSpec((1, c_p), lambda i: (0, 0)),     # b3
            ],
            out_specs=pl.BlockSpec((n_p, c_p), lambda i: (0, 0)),
        ),
        compiler_params=pltpu.CompilerParams(
            dimension_semantics=("arbitrary",),
            vmem_limit_bytes=_VMEM_LIMIT,
        ),
    )(a_p, x_p, w1_p, w2_p, w3_p, b1_p, b2_p, b3_p)


def _transform(x, w, tm):
    n_p, f_p = x.shape
    h_p = w.shape[1]
    return pl.pallas_call(
        _transform_kernel,
        out_shape=jax.ShapeDtypeStruct((n_p, h_p), jnp.bfloat16),
        grid_spec=pltpu.PrefetchScalarGridSpec(
            num_scalar_prefetch=0,
            grid=(n_p // tm,),
            in_specs=[pl.BlockSpec((tm, f_p), lambda i: (i, 0)),
                      pl.BlockSpec((f_p, h_p), lambda i: (0, 0))],   # W resident
            out_specs=pl.BlockSpec((tm, h_p), lambda i: (i, 0)),
        ),
        compiler_params=pltpu.CompilerParams(
            dimension_semantics=("parallel",),
            vmem_limit_bytes=_VMEM_LIMIT,
        ),
    )(x, w)


def _aggregate_relu_transform(a, h, b, w_next, tm, tk):
    n_p = a.shape[0]
    h_p = h.shape[1]
    h_next = w_next.shape[1]
    # NOTE: if a profile shows exposed DMA at row-tile boundaries, sweep
    # pipeline_mode=pl.Buffered(3) on the A_hat spec (secondary to tile size).
    return pl.pallas_call(
        _aggregate_relu_transform_kernel,
        out_shape=jax.ShapeDtypeStruct((n_p, h_next), jnp.bfloat16),
        grid_spec=pltpu.PrefetchScalarGridSpec(
            num_scalar_prefetch=0,
            grid=(n_p // tm, n_p // tk),
            in_specs=[
                pl.BlockSpec((tm, tk), lambda i, k: (i, k)),        # A_hat tile
                pl.BlockSpec((tk, h_p), lambda i, k: (k, 0)),       # H tile (contraction)
                pl.BlockSpec((1, h_p), lambda i, k: (0, 0)),        # bias (resident)
                pl.BlockSpec((h_p, h_next), lambda i, k: (0, 0)),   # next-layer W (resident)
            ],
            out_specs=pl.BlockSpec((tm, h_next), lambda i, k: (i, 0)),
            scratch_shapes=[pltpu.VMEM((tm, h_p), jnp.float32)],    # f32 accumulator
        ),
        compiler_params=pltpu.CompilerParams(
            dimension_semantics=("parallel", "arbitrary"),
            vmem_limit_bytes=_VMEM_LIMIT,
        ),
    )(a, h, b, w_next)


def _aggregate_logsoftmax(a, h, b, valid_cols, tm, tk):
    n_p = a.shape[0]
    c_p = h.shape[1]
    return pl.pallas_call(
        functools.partial(_aggregate_logsoftmax_kernel, valid_cols),
        out_shape=jax.ShapeDtypeStruct((n_p, c_p), jnp.float32),
        grid_spec=pltpu.PrefetchScalarGridSpec(
            num_scalar_prefetch=0,
            grid=(n_p // tm, n_p // tk),
            in_specs=[
                pl.BlockSpec((tm, tk), lambda i, k: (i, k)),
                pl.BlockSpec((tk, c_p), lambda i, k: (k, 0)),
                pl.BlockSpec((1, c_p), lambda i, k: (0, 0)),
            ],
            out_specs=pl.BlockSpec((tm, c_p), lambda i, k: (i, 0)),
            scratch_shapes=[pltpu.VMEM((tm, c_p), jnp.float32)],
        ),
        compiler_params=pltpu.CompilerParams(
            dimension_semantics=("parallel", "arbitrary"),
            vmem_limit_bytes=_VMEM_LIMIT,
        ),
    )(a, h, b)


# ---------------------------------------------------------------------------
# Tile / padding selection (decoupled from each other per perf review)
# ---------------------------------------------------------------------------
def _choose_tiles(n):
    """Padded node count + (row tile, contraction tile) for the tiled path."""
    n_p = _round_up(n, 256)                 # fine padding granularity
    tm = 512 if n_p % 512 == 0 else 256     # bigger row tiles when they divide
    tk = next(t for t in (1024, 512, 256) if n_p % t == 0)
    return n_p, tm, tk


# ---------------------------------------------------------------------------
# Forward pass
# ---------------------------------------------------------------------------
def gcn_forward(x, edge_index, params):
    """3-layer GCN forward (inference): log_softmax(conv3(relu(conv2(relu(conv1(x)))))."""
    (w1, b1), (w2, b2), (w3, b3) = params
    n, f = x.shape
    hidden = w1.shape[1]
    out_dim = w3.shape[1]

    f_p = _round_up(f, 128)
    h_p = _round_up(hidden, 128)
    c_p = _round_up(out_dim, 128)

    fused = n <= _FUSED_MAX_NODES
    if fused:
        n_p = _round_up(n, 128)
        tm = tk = n_p
    else:
        n_p, tm, tk = _choose_tiles(n)

    # A_hat is built directly at padded size and in bf16 (no separate pad+cast
    # pass over an N^2 f32 array).  bf16 MXU operands, f32 biases/accumulation.
    a_p = normalized_adjacency_padded(edge_index, n, n_p)
    x_p = _pad2(x, n_p, f_p).astype(jnp.bfloat16)
    w1_p = _pad2(w1, f_p, h_p).astype(jnp.bfloat16)
    w2_p = _pad2(w2, h_p, h_p).astype(jnp.bfloat16)
    w3_p = _pad2(w3, h_p, c_p).astype(jnp.bfloat16)
    b1_p = _pad2(b1, 1, h_p).astype(jnp.float32)
    b2_p = _pad2(b2, 1, h_p).astype(jnp.float32)
    b3_p = _pad2(b3, 1, c_p).astype(jnp.float32)

    if fused:
        # Single kernel launch, everything resident in VMEM.
        out = _fused_forward(a_p, x_p, w1_p, w2_p, w3_p, b1_p, b2_p, b3_p, out_dim)
    else:
        # conv1 feature transform:  X @ W1
        h = _transform(x_p, w1_p, tm)
        # conv1 aggregate + bias + ReLU, fused with conv2 feature transform.
        h = _aggregate_relu_transform(a_p, h, b1_p, w2_p, tm, tk)
        # conv2 aggregate + bias + ReLU, fused with conv3 feature transform.
        # dropout(p=0.5, training=False) is identity at inference.
        # TODO(synk): training-mode dropout would need pltpu.prng_seed /
        #             prng_random_bits applied to relu(...) before the fused W3 matmul.
        h = _aggregate_relu_transform(a_p, h, b2_p, w3_p, tm, tk)
        # conv3 aggregate + bias + masked log_softmax over the real output lanes.
        out = _aggregate_logsoftmax(a_p, h, b3_p, out_dim, tm, tk)

    return out[:n, :out_dim]


# ---------------------------------------------------------------------------
# Plain-JAX glue: graph normalization, parameters, references
# ---------------------------------------------------------------------------
def normalized_adjacency_padded(edge_index, num_nodes, pad_to):
    """D^-1/2 (A + I) D^-1/2, zero-padded to (pad_to, pad_to), emitted as bf16."""
    src, dst = edge_index[0], edge_index[1]
    a = jnp.zeros((pad_to, pad_to), dtype=jnp.float32)
    a = a.at[dst, src].set(1.0)                               # message: src -> dst
    idx = jnp.arange(num_nodes)
    a = a.at[idx, idx].add(1.0)                               # self loops (real nodes only)
    deg = jnp.sum(a, axis=1)
    d_inv_sqrt = jnp.where(deg > 0, 1.0 / jnp.sqrt(deg), 0.0)
    # normalize + cast fuse into one elementwise pass over the padded array
    return (d_inv_sqrt[:, None] * a * d_inv_sqrt[None, :]).astype(jnp.bfloat16)


def normalized_adjacency(edge_index, num_nodes):
    """Dense f32 D^-1/2 (A + I) D^-1/2 (reference path only)."""
    src, dst = edge_index[0], edge_index[1]
    a = jnp.zeros((num_nodes, num_nodes), dtype=jnp.float32)
    a = a.at[dst, src].set(1.0)
    a = a + jnp.eye(num_nodes, dtype=jnp.float32)
    deg = jnp.sum(a, axis=1)
    d_inv_sqrt = jnp.where(deg > 0, 1.0 / jnp.sqrt(deg), 0.0)
    return d_inv_sqrt[:, None] * a * d_inv_sqrt[None, :]


def glorot(key, shape):
    fan_in, fan_out = shape
    limit = jnp.sqrt(6.0 / (fan_in + fan_out))
    return jax.random.uniform(key, shape, jnp.float32, -limit, limit)


def init_params(key, input_dim, hidden_dim, output_dim):
    k1, k2, k3 = jax.random.split(key, 3)
    w1 = glorot(k1, (input_dim, hidden_dim))
    b1 = jnp.zeros((1, hidden_dim), jnp.float32)
    w2 = glorot(k2, (hidden_dim, hidden_dim))
    b2 = jnp.zeros((1, hidden_dim), jnp.float32)
    w3 = glorot(k3, (hidden_dim, output_dim))
    b3 = jnp.zeros((1, output_dim), jnp.float32)
    return ((w1, b1), (w2, b2), (w3, b3))


def reference_forward_bf16(a_hat, x, params):
    """Pure-JAX reference with the same bf16-operand / f32-accumulation regime."""
    (w1, b1), (w2, b2), (w3, b3) = params

    def mm(p, q):
        return jnp.dot(p.astype(jnp.bfloat16), q.astype(jnp.bfloat16),
                       preferred_element_type=jnp.float32)

    h = jnp.maximum(mm(a_hat, mm(x, w1)) + b1, 0.0)
    h = jnp.maximum(mm(a_hat, mm(h, w2)) + b2, 0.0)
    logits = mm(a_hat, mm(h, w3)) + b3
    return jax.nn.log_softmax(logits, axis=1)


def reference_forward_f32(a_hat, x, params):
    (w1, b1), (w2, b2), (w3, b3) = params
    h = jnp.maximum(a_hat @ (x @ w1) + b1, 0.0)
    h = jnp.maximum(a_hat @ (h @ w2) + b2, 0.0)
    logits = a_hat @ (h @ w3) + b3
    return jax.nn.log_softmax(logits, axis=1)


def _ring_edge_index(num_nodes):
    idx = jnp.arange(num_nodes)
    nxt = (idx + 1) % num_nodes
    return jnp.stack(
        [jnp.concatenate([idx, nxt]), jnp.concatenate([nxt, idx])], axis=0
    ).astype(jnp.int32)


if __name__ == "__main__":
    # Small shapes consistent with the module:
    #   N = 16 nodes, input_dim = 8 selected features, hidden = 16, classes = 2.
    num_nodes, input_dim, hidden_dim, output_dim = 16, 8, 16, 2

    key = jax.random.PRNGKey(0)
    k_x, k_p, k_x2, k_x3 = jax.random.split(key, 4)

    x = jax.random.normal(k_x, (num_nodes, input_dim), dtype=jnp.float32)
    edge_index = _ring_edge_index(num_nodes)               # (2, 32) undirected ring
    params = init_params(k_p, input_dim, hidden_dim, output_dim)

    # Fully-fused single-kernel path (N <= 512).
    out = jax.block_until_ready(gcn_forward(x, edge_index, params))
    assert out.shape == (num_nodes, output_dim)

    a_hat = normalized_adjacency(edge_index, num_nodes)
    ref_bf16 = reference_forward_bf16(a_hat, x, params)
    ref_f32 = reference_forward_f32(a_hat, x, params)
    assert jnp.allclose(out, ref_bf16, atol=2e-3, rtol=2e-3), \
        float(jnp.max(jnp.abs(out - ref_bf16)))
    assert jnp.allclose(out, ref_f32, atol=1e-1, rtol=1e-1), \
        float(jnp.max(jnp.abs(out - ref_f32)))

    # Mid-size graph: still fused (N=600 -> n_p=640 resident, one launch).
    n2 = 600
    x2 = jax.random.normal(k_x2, (n2, input_dim), dtype=jnp.float32)
    e2 = _ring_edge_index(n2)
    out2 = jax.block_until_ready(gcn_forward(x2, e2, params))
    ref2 = reference_forward_bf16(normalized_adjacency(e2, n2), x2, params)
    assert out2.shape == (n2, output_dim)
    assert jnp.allclose(out2, ref2, atol=2e-3, rtol=2e-3), \
        float(jnp.max(jnp.abs(out2 - ref2)))

    # Larger graph: exercises the tiled (parallel row x arbitrary contraction)
    # path with real accumulation across contraction tiles (n_p=1536, tm=512, tk=512).
    n3 = 1536
    x3 = jax.random.normal(k_x3, (n3, input_dim), dtype=jnp.float32)
    e3 = _ring_edge_index(n3)
    out3 = jax.block_until_ready(gcn_forward(x3, e3, params))
    ref3 = reference_forward_bf16(normalized_adjacency(e3, n3), x3, params)
    assert out3.shape == (n3, output_dim)
    assert jnp.allclose(out3, ref3, atol=2e-3, rtol=2e-3), \
        float(jnp.max(jnp.abs(out3 - ref3)))

    print("KERNEL_OK")
</pallas_src>

<mosaic_0001>
module attributes {stable_mosaic.version = 11 : i64} {
  func.func @_fused_gcn_kernel(%arg0: i32, %arg1: memref<128x128xbf16, #tpu.memory_space<vmem>>, %arg2: memref<128x128xbf16, #tpu.memory_space<vmem>>, %arg3: memref<128x128xbf16, #tpu.memory_space<vmem>>, %arg4: memref<128x128xbf16, #tpu.memory_space<vmem>>, %arg5: memref<128x128xbf16, #tpu.memory_space<vmem>>, %arg6: memref<1x128xf32, #tpu.memory_space<vmem>>, %arg7: memref<1x128xf32, #tpu.memory_space<vmem>>, %arg8: memref<1x128xf32, #tpu.memory_space<vmem>>, %arg9: memref<128x128xf32, #tpu.memory_space<vmem>>) attributes {dimension_semantics = [#tpu.dimension_semantics<arbitrary>], iteration_bounds = array<i64: 1>, scalar_prefetch = 0 : i64, scratch_operands = 0 : i64, tpu.core_type = #tpu.core_type<tc>, window_params = [{pipeline_mode = #tpu.pipeline_mode<synchronous>, transform_indices = @transform_0, window_bounds = array<i64: 128, 128>}, {pipeline_mode = #tpu.pipeline_mode<synchronous>, transform_indices = @transform_1, window_bounds = array<i64: 128, 128>}, {pipeline_mode = #tpu.pipeline_mode<synchronous>, transform_indices = @transform_2, window_bounds = array<i64: 128, 128>}, {pipeline_mode = #tpu.pipeline_mode<synchronous>, transform_indices = @transform_3, window_bounds = array<i64: 128, 128>}, {pipeline_mode = #tpu.pipeline_mode<synchronous>, transform_indices = @transform_4, window_bounds = array<i64: 128, 128>}, {pipeline_mode = #tpu.pipeline_mode<synchronous>, transform_indices = @transform_5, window_bounds = array<i64: 1, 128>}, {pipeline_mode = #tpu.pipeline_mode<synchronous>, transform_indices = @transform_6, window_bounds = array<i64: 1, 128>}, {pipeline_mode = #tpu.pipeline_mode<synchronous>, transform_indices = @transform_7, window_bounds = array<i64: 1, 128>}, {pipeline_mode = #tpu.pipeline_mode<synchronous>, transform_indices = @transform_8, window_bounds = array<i64: 128, 128>}]} {
    %c0 = arith.constant 0 : index
    %c0_0 = arith.constant 0 : index
    %0 = vector.load %arg1[%c0, %c0_0] : memref<128x128xbf16, #tpu.memory_space<vmem>>, vector<128x128xbf16>
    %c0_1 = arith.constant 0 : index
    %c0_2 = arith.constant 0 : index
    %1 = vector.load %arg2[%c0_1, %c0_2] : memref<128x128xbf16, #tpu.memory_space<vmem>>, vector<128x128xbf16>
    %c0_3 = arith.constant 0 : index
    %c0_4 = arith.constant 0 : index
    %2 = vector.load %arg3[%c0_3, %c0_4] : memref<128x128xbf16, #tpu.memory_space<vmem>>, vector<128x128xbf16>
    %cst = arith.constant dense<0.000000e+00> : vector<128x128xf32>
    %3 = tpu.matmul %1, %2, %cst {dimension_numbers = #tpu.dot_dimension_numbers<[1], [0], [0], [1], [0, 0, 1, 1], [], []>} : vector<128x128xbf16>, vector<128x128xbf16>, vector<128x128xf32> -> vector<128x128xf32>
    %4 = arith.truncf %3 : vector<128x128xf32> to vector<128x128xbf16>
    %cst_5 = arith.constant dense<0.000000e+00> : vector<128x128xf32>
    %5 = tpu.matmul %0, %4, %cst_5 {dimension_numbers = #tpu.dot_dimension_numbers<[1], [0], [0], [1], [0, 0, 1, 1], [], []>} : vector<128x128xbf16>, vector<128x128xbf16>, vector<128x128xf32> -> vector<128x128xf32>
    %c0_6 = arith.constant 0 : index
    %c0_7 = arith.constant 0 : index
    %6 = vector.load %arg6[%c0_6, %c0_7] : memref<1x128xf32, #tpu.memory_space<vmem>>, vector<1x128xf32>
    %7 = vector.broadcast %6 : vector<1x128xf32> to vector<128x128xf32>
    %8 = arith.addf %5, %7 : vector<128x128xf32>
    %cst_8 = arith.constant 0.000000e+00 : f32
    %9 = vector.broadcast %cst_8 : f32 to vector<128x128xf32>
    %10 = arith.maximumf %8, %9 : vector<128x128xf32>
    %11 = arith.truncf %10 : vector<128x128xf32> to vector<128x128xbf16>
    %c0_9 = arith.constant 0 : index
    %c0_10 = arith.constant 0 : index
    %12 = vector.load %arg4[%c0_9, %c0_10] : memref<128x128xbf16, #tpu.memory_space<vmem>>, vector<128x128xbf16>
    %cst_11 = arith.constant dense<0.000000e+00> : vector<128x128xf32>
    %13 = tpu.matmul %11, %12, %cst_11 {dimension_numbers = #tpu.dot_dimension_numbers<[1], [0], [0], [1], [0, 0, 1, 1], [], []>} : vector<128x128xbf16>, vector<128x128xbf16>, vector<128x128xf32> -> vector<128x128xf32>
    %14 = arith.truncf %13 : vector<128x128xf32> to vector<128x128xbf16>
    %cst_12 = arith.constant dense<0.000000e+00> : vector<128x128xf32>
    %15 = tpu.matmul %0, %14, %cst_12 {dimension_numbers = #tpu.dot_dimension_numbers<[1], [0], [0], [1], [0, 0, 1, 1], [], []>} : vector<128x128xbf16>, vector<128x128xbf16>, vector<128x128xf32> -> vector<128x128xf32>
    %c0_13 = arith.constant 0 : index
    %c0_14 = arith.constant 0 : index
    %16 = vector.load %arg7[%c0_13, %c0_14] : memref<1x128xf32, #tpu.memory_space<vmem>>, vector<1x128xf32>
    %17 = vector.broadcast %16 : vector<1x128xf32> to vector<128x128xf32>
    %18 = arith.addf %15, %17 : vector<128x128xf32>
    %cst_15 = arith.constant 0.000000e+00 : f32
    %19 = vector.broadcast %cst_15 : f32 to vector<128x128xf32>
    %20 = arith.maximumf %18, %19 : vector<128x128xf32>
    %21 = arith.truncf %20 : vector<128x128xf32> to vector<128x128xbf16>
    %c0_16 = arith.constant 0 : index
    %c0_17 = arith.constant 0 : index
    %22 = vector.load %arg5[%c0_16, %c0_17] : memref<128x128xbf16, #tpu.memory_space<vmem>>, vector<128x128xbf16>
    %cst_18 = arith.constant dense<0.000000e+00> : vector<128x128xf32>
    %23 = tpu.matmul %21, %22, %cst_18 {dimension_numbers = #tpu.dot_dimension_numbers<[1], [0], [0], [1], [0, 0, 1, 1], [], []>} : vector<128x128xbf16>, vector<128x128xbf16>, vector<128x128xf32> -> vector<128x128xf32>
    %24 = arith.truncf %23 : vector<128x128xf32> to vector<128x128xbf16>
    %cst_19 = arith.constant dense<0.000000e+00> : vector<128x128xf32>
    %25 = tpu.matmul %0, %24, %cst_19 {dimension_numbers = #tpu.dot_dimension_numbers<[1], [0], [0], [1], [0, 0, 1, 1], [], []>} : vector<128x128xbf16>, vector<128x128xbf16>, vector<128x128xf32> -> vector<128x128xf32>
    %c0_20 = arith.constant 0 : index
    %c0_21 = arith.constant 0 : index
    %26 = vector.load %arg8[%c0_20, %c0_21] : memref<1x128xf32, #tpu.memory_space<vmem>>, vector<1x128xf32>
    %27 = vector.broadcast %26 : vector<1x128xf32> to vector<128x128xf32>
    %28 = arith.addf %25, %27 : vector<128x128xf32>
    %29 = tpu.iota {dimensions = array<i32: 1>} : vector<128x128xi32>
    %c2_i32 = arith.constant 2 : i32
    %30 = vector.broadcast %c2_i32 : i32 to vector<128x128xi32>
    %31 = arith.cmpi slt, %29, %30 : vector<128x128xi32>
    %cst_22 = arith.constant -1.000000e+30 : f32
    %32 = vector.broadcast %cst_22 : f32 to vector<128x128xf32>
    %33 = arith.select %31, %28, %32 : vector<128x128xi1>, vector<128x128xf32>
    %cst_23 = arith.constant dense<0xFF800000> : vector<128xf32>
    %34 = vector.multi_reduction <maximumf>, %33, %cst_23 [1] : vector<128x128xf32> to vector<128xf32>
    %35 = vector.shape_cast %34 : vector<128xf32> to vector<128x1xf32>
    %36 = vector.broadcast %35 : vector<128x1xf32> to vector<128x128xf32>
    %37 = arith.subf %33, %36 : vector<128x128xf32>
    %38 = math.exp %37 : vector<128x128xf32>
    %cst_24 = arith.constant dense<0.000000e+00> : vector<128xf32>
    %39 = vector.multi_reduction <add>, %38, %cst_24 [1] : vector<128x128xf32> to vector<128xf32>
    %40 = vector.shape_cast %39 : vector<128xf32> to vector<128x1xf32>
    %41 = math.log %40 : vector<128x1xf32>
    %42 = vector.broadcast %41 : vector<128x1xf32> to vector<128x128xf32>
    %43 = arith.subf %37, %42 : vector<128x128xf32>
    %c0_25 = arith.constant 0 : index
    %c0_26 = arith.constant 0 : index
    %44 = vector.load %arg9[%c0_25, %c0_26] : memref<128x128xf32, #tpu.memory_space<vmem>>, vector<128x128xf32>
    tpu.vector_store %arg9[%c0_25, %c0_26], %43 {strides = array<i32>} : memref<128x128xf32, #tpu.memory_space<vmem>>, vector<128x128xf32>,
    return
  }
  func.func @transform_0(%arg0: i32) -> (i32, i32) {
    %c0_i32 = arith.constant 0 : i32
    %c0_i32_0 = arith.constant 0 : i32
    %c0_i32_1 = arith.constant 0 : i32
    return %c0_i32, %c0_i32_0 : i32, i32
  }
  func.func @transform_1(%arg0: i32) -> (i32, i32) {
    %c0_i32 = arith.constant 0 : i32
    %c0_i32_0 = arith.constant 0 : i32
    %c0_i32_1 = arith.constant 0 : i32
    return %c0_i32, %c0_i32_0 : i32, i32
  }
  func.func @transform_2(%arg0: i32) -> (i32, i32) {
    %c0_i32 = arith.constant 0 : i32
    %c0_i32_0 = arith.constant 0 : i32
    %c0_i32_1 = arith.constant 0 : i32
    return %c0_i32, %c0_i32_0 : i32, i32
  }
  func.func @transform_3(%arg0: i32) -> (i32, i32) {
    %c0_i32 = arith.constant 0 : i32
    %c0_i32_0 = arith.constant 0 : i32
    %c0_i32_1 = arith.constant 0 : i32
    return %c0_i32, %c0_i32_0 : i32, i32
  }
  func.func @transform_4(%arg0: i32) -> (i32, i32) {
    %c0_i32 = arith.constant 0 : i32
    %c0_i32_0 = arith.constant 0 : i32
    %c0_i32_1 = arith.constant 0 : i32
    return %c0_i32, %c0_i32_0 : i32, i32
  }
  func.func @transform_5(%arg0: i32) -> (i32, i32) {
    %c0_i32 = arith.constant 0 : i32
    %c0_i32_0 = arith.constant 0 : i32
    %c0_i32_1 = arith.constant 0 : i32
    return %c0_i32, %c0_i32_0 : i32, i32
  }
  func.func @transform_6(%arg0: i32) -> (i32, i32) {
    %c0_i32 = arith.constant 0 : i32
    %c0_i32_0 = arith.constant 0 : i32
    %c0_i32_1 = arith.constant 0 : i32
    return %c0_i32, %c0_i32_0 : i32, i32
  }
  func.func @transform_7(%arg0: i32) -> (i32, i32) {
    %c0_i32 = arith.constant 0 : i32
    %c0_i32_0 = arith.constant 0 : i32
    %c0_i32_1 = arith.constant 0 : i32
    return %c0_i32, %c0_i32_0 : i32, i32
  }
  func.func @transform_8(%arg0: i32) -> (i32, i32) {
    %c0_i32 = arith.constant 0 : i32
    %c0_i32_0 = arith.constant 0 : i32
    %c0_i32_1 = arith.constant 0 : i32
    return %c0_i32, %c0_i32_0 : i32, i32
  }
}

</mosaic_0001>

<llo_original>
// kernel: tpu_custom_call.1
$region0: #{tpu_custom_call.1}
  #allocation0 [shape = 'u32[]', space=smem, size = 0x4, offset = 0x4, fixed_abs, tag = 'smem constant byte address 0x4 - core index']
  #allocation1 [shape = 'u32[72,128]{1,0:T(1,128)}', space=vmem, size = 0x9000, scoped, tag = 'internal scratch']
  %s0 = inlined_call_operand.hbm [shape: bf16[128,128], index: 0, kind: input, shape index: {}]
  %s1 = inlined_call_operand.hbm [shape: bf16[128,128], index: 1, kind: input, shape index: {}]
  %s2 = inlined_call_operand.hbm [shape: bf16[128,128], index: 2, kind: input, shape index: {}]
  %s3 = inlined_call_operand.hbm [shape: bf16[128,128], index: 3, kind: input, shape index: {}]
  %s4 = inlined_call_operand.hbm [shape: bf16[128,128], index: 4, kind: input, shape index: {}]
  %s5 = inlined_call_operand.vmem [shape: f32[1,128], index: 5, kind: input, shape index: {}]
  %s6 = inlined_call_operand.vmem [shape: f32[1,128], index: 6, kind: input, shape index: {}]
  %s7 = inlined_call_operand.vmem [shape: f32[1,128], index: 7, kind: input, shape index: {}]
  %s8 = inlined_call_operand.hbm [shape: f32[128,128], index: 8, kind: output, shape index: {}]
  %s9 = sld [smem:[#allocation0]]
  $region62: #{tpu_custom_call.1} parent=0
    _
  %s11 = ssub.s32 1, %s9
  %s12 = scalar_select 0, %s11, %s9
  $region1: #{tpu_custom_call.1} parent=0
    #allocation2 [shape = 'u8[32768]{0}', space=vmem, size = 0x8000, scoped, tag = 'input window, operand 0, single buffered']
    #allocation3 [shape = 's32[1]{0}', space=sflag, size = 0x4, scoped, tag = 'scoped memory for tpu_custom_call.1']
    #allocation4 [shape = 's32[1]{0}', space=sflag, size = 0x4, scoped, tag = 'scoped memory for tpu_custom_call.1']
    #allocation5 [shape = 'u8[32768]{0}', space=vmem, size = 0x8000, scoped, tag = 'input window, operand 1, single buffered']
    #allocation6 [shape = 's32[1]{0}', space=sflag, size = 0x4, scoped, tag = 'scoped memory for tpu_custom_call.1']
    #allocation7 [shape = 'u8[32768]{0}', space=vmem, size = 0x8000, scoped, tag = 'input window, operand 2, single buffered']
    #allocation8 [shape = 'u8[32768]{0}', space=vmem, size = 0x8000, scoped, tag = 'input window, operand 3, single buffered']
    #allocation9 [shape = 's32[1]{0}', space=sflag, size = 0x4, scoped, tag = 'scoped memory for tpu_custom_call.1']
    #allocation10 [shape = 'u8[32768]{0}', space=vmem, size = 0x8000, scoped, tag = 'input window, operand 4, single buffered']
    #allocation11 [shape = 'u8[65536]{0}', space=vmem, size = 0x10000, scoped, tag = 'output window, operand 0, single buffered']
    %13 = vsyncpa [#allocation3], 0
    %14 = vsyncpa [#allocation6], 0
    %15 = vsyncpa [#allocation9], 0
    %16 = vsyncpa [#allocation4], 0
    // Predicated region
    $region2: #{tpu_custom_call.1} parent=1 // pred_check
      _
    $region3: #{tpu_custom_call.1} parent=1 // pred_check_branch
      %18 = sbr.rel (0) target = $region5
    $region4: #{tpu_custom_call.1} parent=1 // pred_region
      %20 = vsyncadd [#allocation3], 0
      %s21 = sshll.u32 %s0, 4
      %s22 = int_to_ptr.hbm [resolvable:$true] %s21
      %s23 = sshll.u32 [#allocation2], 4
      %s24 = int_to_ptr.vmem [resolvable:$true] %s23
      %29 = dma.hbm_to_vmem [thread:$0]  %s22, 1024, %s24, [#allocation3], 64, 64, 4
    $region5: #{tpu_custom_call.1} parent=1 // pred_fallthru
      _
    // Predicated region
    $region6: #{tpu_custom_call.1} parent=1 // pred_check
      _
    $region7: #{tpu_custom_call.1} parent=1 // pred_check_branch
      %31 = sbr.rel (0) target = $region9
    $region8: #{tpu_custom_call.1} parent=1 // pred_region
      %33 = vsyncadd [#allocation6], 0
      %s34 = sshll.u32 %s1, 4
      %s35 = int_to_ptr.hbm [resolvable:$true] %s34
      %s36 = sshll.u32 [#allocation5], 4
      %s37 = int_to_ptr.vmem [resolvable:$true] %s36
      %42 = dma.hbm_to_vmem [thread:$0]  %s35, 1024, %s37, [#allocation6], 64, 64, 4
    $region9: #{tpu_custom_call.1} parent=1 // pred_fallthru
      _
    // Predicated region
    $region10: #{tpu_custom_call.1} parent=1 // pred_check
      _
    $region11: #{tpu_custom_call.1} parent=1 // pred_check_branch
      %44 = sbr.rel (0) target = $region13
    $region12: #{tpu_custom_call.1} parent=1 // pred_region
      %46 = vsyncadd [#allocation6], 0
      %s47 = sshll.u32 %s2, 4
      %s48 = int_to_ptr.hbm [resolvable:$true] %s47
      %s49 = sshll.u32 [#allocation7], 4
      %s50 = int_to_ptr.vmem [resolvable:$true] %s49
      %55 = dma.hbm_to_vmem [thread:$0]  %s48, 1024, %s50, [#allocation6], 64, 64, 4
    $region13: #{tpu_custom_call.1} parent=1 // pred_fallthru
      _
    // Predicated region
    $region14: #{tpu_custom_call.1} parent=1 // pred_check
      _
    $region15: #{tpu_custom_call.1} parent=1 // pred_check_branch
      %57 = sbr.rel (0) target = $region17
    $region16: #{tpu_custom_call.1} parent=1 // pred_region
      %59 = vsyncadd [#allocation9], 0
      %s60 = sshll.u32 %s3, 4
      %s61 = int_to_ptr.hbm [resolvable:$true] %s60
      %s62 = sshll.u32 [#allocation8], 4
      %s63 = int_to_ptr.vmem [resolvable:$true] %s62
      %68 = dma.hbm_to_vmem [thread:$0]  %s61, 1024, %s63, [#allocation9], 64, 64, 4
    $region17: #{tpu_custom_call.1} parent=1 // pred_fallthru
      _
    // Predicated region
    $region18: #{tpu_custom_call.1} parent=1 // pred_check
      _
    $region19: #{tpu_custom_call.1} parent=1 // pred_check_branch
      %70 = sbr.rel (0) target = $region21
    $region20: #{tpu_custom_call.1} parent=1 // pred_region
      %72 = vsyncadd [#allocation9], 0
      %s73 = sshll.u32 %s4, 4
      %s74 = int_to_ptr.hbm [resolvable:$true] %s73
      %s75 = sshll.u32 [#allocation10], 4
      %s76 = int_to_ptr.vmem [resolvable:$true] %s75
      %81 = dma.hbm_to_vmem [thread:$0]  %s74, 1024, %s76, [#allocation9], 64, 64, 4
    $region21: #{tpu_custom_call.1} parent=1 // pred_fallthru
      _
    // Predicated region
    $region22: #{tpu_custom_call.1} parent=1 // pred_check
      _
    $region23: #{tpu_custom_call.1} parent=1 // pred_check_branch
      %83 = sbr.rel (0) target = $region25
    $region24: #{tpu_custom_call.1} parent=1 // pred_region
      _
    $region25: #{tpu_custom_call.1} parent=1 // pred_fallthru
      _
    // Predicated region
    $region26: #{tpu_custom_call.1} parent=1 // pred_check
      _
    $region27: #{tpu_custom_call.1} parent=1 // pred_check_branch
      %85 = sbr.rel (0) target = $region29
    $region28: #{tpu_custom_call.1} parent=1 // pred_region
      _
    $region29: #{tpu_custom_call.1} parent=1 // pred_fallthru
      _
    // Predicated region
    $region30: #{tpu_custom_call.1} parent=1 // pred_check
      _
    $region31: #{tpu_custom_call.1} parent=1 // pred_check_branch
      %87 = sbr.rel (0) target = $region33
    $region32: #{tpu_custom_call.1} parent=1 // pred_region
      _
    $region33: #{tpu_custom_call.1} parent=1 // pred_fallthru
      _
    // Predicated region
    $region34: #{tpu_custom_call.1} parent=1 // pred_check
      _
    $region35: #{tpu_custom_call.1} parent=1 // pred_check_branch
      %89 = sbr.rel (0) target = $region37
    $region36: #{tpu_custom_call.1} parent=1 // pred_region
      %91 = dma.done [#allocation3], 1024
    $region37: #{tpu_custom_call.1} parent=1 // pred_fallthru
      _
    // Predicated region
    $region38: #{tpu_custom_call.1} parent=1 // pred_check
      _
    $region39: #{tpu_custom_call.1} parent=1 // pred_check_branch
      %93 = sbr.rel (0) target = $region41
    $region40: #{tpu_custom_call.1} parent=1 // pred_region
      %95 = dma.done [#allocation6], 1024
    $region41: #{tpu_custom_call.1} parent=1 // pred_fallthru
      _
    // Predicated region
    $region42: #{tpu_custom_call.1} parent=1 // pred_check
      _
    $region43: #{tpu_custom_call.1} parent=1 // pred_check_branch
      %97 = sbr.rel (0) target = $region45
    $region44: #{tpu_custom_call.1} parent=1 // pred_region
      %99 = dma.done [#allocation6], 1024
    $region45: #{tpu_custom_call.1} parent=1 // pred_fallthru
      _
    // Predicated region
    $region46: #{tpu_custom_call.1} parent=1 // pred_check
      _
    $region47: #{tpu_custom_call.1} parent=1 // pred_check_branch
      %101 = sbr.rel (0) target = $region49
    $region48: #{tpu_custom_call.1} parent=1 // pred_region
      %103 = dma.done [#allocation9], 1024
    $region49: #{tpu_custom_call.1} parent=1 // pred_fallthru
      _
    // Predicated region
    $region50: #{tpu_custom_call.1} parent=1 // pred_check
      _
    $region51: #{tpu_custom_call.1} parent=1 // pred_check_branch
      %105 = sbr.rel (0) target = $region53
    $region52: #{tpu_custom_call.1} parent=1 // pred_region
      %107 = dma.done [#allocation9], 1024
    $region53: #{tpu_custom_call.1} parent=1 // pred_fallthru
      _
    %v108 = vld [vmem:[#allocation2] sm:$0xf]
    %v109 = vld [vmem:[#allocation2 + $0x4] sm:$0xf]
    %v110 = vld [vmem:[#allocation2 + $0x8] sm:$0xf]
    %v111 = vld [vmem:[#allocation2 + $0xc] sm:$0xf]
    %v112 = vld [vmem:[#allocation2 + $0x10] sm:$0xf]
    %v113 = vld [vmem:[#allocation2 + $0x14] sm:$0xf]
    %v114 = vld [vmem:[#allocation2 + $0x18] sm:$0xf]
    %v115 = vld [vmem:[#allocation2 + $0x1c] sm:$0xf]
    %v116 = vld [vmem:[#allocation2 + $0x20] sm:$0xf]
    %v117 = vld [vmem:[#allocation2 + $0x24] sm:$0xf]
    %v118 = vld [vmem:[#allocation2 + $0x28] sm:$0xf]
    %v119 = vld [vmem:[#allocation2 + $0x2c] sm:$0xf]
    %v120 = vld [vmem:[#allocation2 + $0x30] sm:$0xf]
    %v121 = vld [vmem:[#allocation2 + $0x34] sm:$0xf]
    %v122 = vld [vmem:[#allocation2 + $0x38] sm:$0xf]
    %v123 = vld [vmem:[#allocation2 + $0x3c] sm:$0xf]
    %v124 = vld [vmem:[#allocation5] sm:$0xf]
    %v125 = vld [vmem:[#allocation5 + $0x4] sm:$0xf]
    %v126 = vld [vmem:[#allocation5 + $0x8] sm:$0xf]
    %v127 = vld [vmem:[#allocation5 + $0xc] sm:$0xf]
    %v128 = vld [vmem:[#allocation5 + $0x10] sm:$0xf]
    %v129 = vld [vmem:[#allocation5 + $0x14] sm:$0xf]
    %v130 = vld [vmem:[#allocation5 + $0x18] sm:$0xf]
    %v131 = vld [vmem:[#allocation5 + $0x1c] sm:$0xf]
    %v132 = vld [vmem:[#allocation5 + $0x20] sm:$0xf]
    %v133 = vld [vmem:[#allocation5 + $0x24] sm:$0xf]
    %v134 = vld [vmem:[#allocation5 + $0x28] sm:$0xf]
    %v135 = vld [vmem:[#allocation5 + $0x2c] sm:$0xf]
    %v136 = vld [vmem:[#allocation5 + $0x30] sm:$0xf]
    %v137 = vld [vmem:[#allocation5 + $0x34] sm:$0xf]
    %v138 = vld [vmem:[#allocation5 + $0x38] sm:$0xf]
    %v139 = vld [vmem:[#allocation5 + $0x3c] sm:$0xf]
    %v140 = vld [vmem:[#allocation7] sm:$0xf]
    %v141 = vld [vmem:[#allocation7 + $0x4] sm:$0xf]
    %v142 = vld [vmem:[#allocation7 + $0x8] sm:$0xf]
    %v143 = vld [vmem:[#allocation7 + $0xc] sm:$0xf]
    %v144 = vld [vmem:[#allocation7 + $0x10] sm:$0xf]
    %v145 = vld [vmem:[#allocation7 + $0x14] sm:$0xf]
    %v146 = vld [vmem:[#allocation7 + $0x18] sm:$0xf]
    %v147 = vld [vmem:[#allocation7 + $0x1c] sm:$0xf]
    %v148 = vld [vmem:[#allocation7 + $0x20] sm:$0xf]
    %v149 = vld [vmem:[#allocation7 + $0x24] sm:$0xf]
    %v150 = vld [vmem:[#allocation7 + $0x28] sm:$0xf]
    %v151 = vld [vmem:[#allocation7 + $0x2c] sm:$0xf]
    %v152 = vld [vmem:[#allocation7 + $0x30] sm:$0xf]
    %v153 = vld [vmem:[#allocation7 + $0x34] sm:$0xf]
    %v154 = vld [vmem:[#allocation7 + $0x38] sm:$0xf]
    %v155 = vld [vmem:[#allocation7 + $0x3c] sm:$0xf]
    %v172 = vunpack.c.l.b16 %v124
    %v173 = vunpack.c.l.b16 %v125
    %v174 = vunpack.c.l.b16 %v126
    %v175 = vunpack.c.l.b16 %v127
    %v176 = vunpack.c.l.b16 %v128
    %v177 = vunpack.c.l.b16 %v129
    %v178 = vunpack.c.l.b16 %v130
    %v179 = vunpack.c.l.b16 %v131
    %v180 = vunpack.c.l.b16 %v132
    %v181 = vunpack.c.l.b16 %v133
    %v182 = vunpack.c.l.b16 %v134
    %v183 = vunpack.c.l.b16 %v135
    %v184 = vunpack.c.l.b16 %v136
    %v185 = vunpack.c.l.b16 %v137
    %v186 = vunpack.c.l.b16 %v138
    %v187 = vunpack.c.l.b16 %v139
    %v188 = vpack.c.b16 %v173, %v172
    %v189 = vpack.c.b16 %v175, %v174
    %v190 = vpack.c.b16 %v177, %v176
    %v191 = vpack.c.b16 %v179, %v178
    %v192 = vpack.c.b16 %v181, %v180
    %v193 = vpack.c.b16 %v183, %v182
    %v194 = vpack.c.b16 %v185, %v184
    %v195 = vpack.c.b16 %v187, %v186
    %v220 = vunpack.c.l.b16 %v140
    %v221 = vunpack.c.l.b16 %v141
    %v222 = vunpack.c.l.b16 %v142
    %v223 = vunpack.c.l.b16 %v143
    %v224 = vunpack.c.l.b16 %v144
    %v225 = vunpack.c.l.b16 %v145
    %v226 = vunpack.c.l.b16 %v146
    %v227 = vunpack.c.l.b16 %v147
    %v228 = vunpack.c.l.b16 %v148
    %v229 = vunpack.c.l.b16 %v149
    %v230 = vunpack.c.l.b16 %v150
    %v231 = vunpack.c.l.b16 %v151
    %v232 = vunpack.c.l.b16 %v152
    %v233 = vunpack.c.l.b16 %v153
    %v234 = vunpack.c.l.b16 %v154
    %v235 = vunpack.c.l.b16 %v155
    %v236 = vpack.c.b16 %v221, %v220
    %v237 = vpack.c.b16 %v223, %v222
    %v238 = vpack.c.b16 %v225, %v224
    %v239 = vpack.c.b16 %v227, %v226
    %v240 = vpack.c.b16 %v229, %v228
    %v241 = vpack.c.b16 %v231, %v230
    %v242 = vpack.c.b16 %v233, %v232
    %v243 = vpack.c.b16 %v235, %v234
    %252 = vmatpush.bf16.msra.mxu0 %v243
    %253 = vmatpush.bf16.msra.mxu0 %v242
    %254 = vmatpush.bf16.msra.mxu0 %v241
    %255 = vmatpush.bf16.msra.mxu0 %v240
    %256 = vmatpush.bf16.msra.mxu0 %v239
    %257 = vmatpush.bf16.msra.mxu0 %v238
    %258 = vmatpush.bf16.msra.mxu0 %v237
    %259 = vmatpush.bf16.msra.mxu0 %v236
    %260 = vmatmul.bf16.gmra.mxu0 %v188
    %v261 = vpop.f32.mrf.mxu0
    %v262 = vadd.f32 0.0, %v261
    %v263 = vpop.f32.mrf.mxu0
    %v264 = vadd.f32 0.0, %v263
    %265 = vmatmul.bf16.gmra.mxu0 %v189
    %v266 = vpop.f32.mrf.mxu0
    %v267 = vadd.f32 0.0, %v266
    %v268 = vpop.f32.mrf.mxu0
    %v269 = vadd.f32 0.0, %v268
    %270 = vmatmul.bf16.gmra.mxu0 %v190
    %v271 = vpop.f32.mrf.mxu0
    %v272 = vadd.f32 0.0, %v271
    %v273 = vpop.f32.mrf.mxu0
    %v274 = vadd.f32 0.0, %v273
    %275 = vmatmul.bf16.gmra.mxu0 %v191
    %v276 = vpop.f32.mrf.mxu0
    %v277 = vadd.f32 0.0, %v276
    %v278 = vpop.f32.mrf.mxu0
    %v279 = vadd.f32 0.0, %v278
    %280 = vmatmul.bf16.gmra.mxu0 %v192
    %v281 = vpop.f32.mrf.mxu0
    %v282 = vadd.f32 0.0, %v281
    %v283 = vpop.f32.mrf.mxu0
    %v284 = vadd.f32 0.0, %v283
    %285 = vmatmul.bf16.gmra.mxu0 %v193
    %v286 = vpop.f32.mrf.mxu0
    %v287 = vadd.f32 0.0, %v286
    %v288 = vpop.f32.mrf.mxu0
    %v289 = vadd.f32 0.0, %v288
    %290 = vmatmul.bf16.gmra.mxu0 %v194
    %v291 = vpop.f32.mrf.mxu0
    %v292 = vadd.f32 0.0, %v291
    %v293 = vpop.f32.mrf.mxu0
    %v294 = vadd.f32 0.0, %v293
    %295 = vmatmul.bf16.gmra.mxu0 %v195
    %v296 = vpop.f32.mrf.mxu0
    %v297 = vadd.f32 0.0, %v296
    %v298 = vpop.f32.mrf.mxu0
    %v299 = vadd.f32 0.0, %v298
    %300 = vdwg.mxu0
    %v301 = vpack.c.bf16 %v264, %v262
    %v302 = vpack.c.bf16 %v269, %v267
    %v303 = vpack.c.bf16 %v274, %v272
    %v304 = vpack.c.bf16 %v279, %v277
    %v305 = vpack.c.bf16 %v284, %v282
    %v306 = vpack.c.bf16 %v289, %v287
    %v307 = vpack.c.bf16 %v294, %v292
    %v308 = vpack.c.bf16 %v299, %v297
    %v309 = vld [vmem:[%s5] sm:$0x1]
    %v311 = vperm.slane %v309, 0
    %v329 = vunpack.c.l.b16 %v108
    %v330 = vunpack.c.l.b16 %v109
    %v331 = vunpack.c.l.b16 %v110
    %v332 = vunpack.c.l.b16 %v111
    %v333 = vunpack.c.l.b16 %v112
    %v334 = vunpack.c.l.b16 %v113
    %v335 = vunpack.c.l.b16 %v114
    %v336 = vunpack.c.l.b16 %v115
    %v337 = vunpack.c.l.b16 %v116
    %v338 = vunpack.c.l.b16 %v117
    %v339 = vunpack.c.l.b16 %v118
    %v340 = vunpack.c.l.b16 %v119
    %v341 = vunpack.c.l.b16 %v120
    %v342 = vunpack.c.l.b16 %v121
    %v343 = vunpack.c.l.b16 %v122
    %v344 = vunpack.c.l.b16 %v123
    %v345 = vpack.c.b16 %v330, %v329
    %v346 = vpack.c.b16 %v332, %v331
    %v347 = vpack.c.b16 %v334, %v333
    %v348 = vpack.c.b16 %v336, %v335
    %v349 = vpack.c.b16 %v338, %v337
    %v350 = vpack.c.b16 %v340, %v339
    %v351 = vpack.c.b16 %v342, %v341
    %v352 = vpack.c.b16 %v344, %v343
    %361 = vmatpush.bf16.msra.mxu0 %v308
    %362 = vmatpush.bf16.msra.mxu0 %v307
    %363 = vmatpush.bf16.msra.mxu0 %v306
    %364 = vmatpush.bf16.msra.mxu0 %v305
    %365 = vmatpush.bf16.msra.mxu0 %v304
    %366 = vmatpush.bf16.msra.mxu0 %v303
    %367 = vmatpush.bf16.msra.mxu0 %v302
    %368 = vmatpush.bf16.msra.mxu0 %v301
    %369 = vmatmul.bf16.gmra.mxu0 %v345
    %v370 = vpop.f32.mrf.mxu0
    %v371 = vadd.f32 %v311, %v370
    %v372 = vpop.f32.mrf.mxu0
    %v373 = vadd.f32 %v311, %v372
    %374 = vmatmul.bf16.gmra.mxu0 %v346
    %v375 = vpop.f32.mrf.mxu0
    %v376 = vadd.f32 %v311, %v375
    %v377 = vpop.f32.mrf.mxu0
    %v378 = vadd.f32 %v311, %v377
    %379 = vmatmul.bf16.gmra.mxu0 %v347
    %v380 = vpop.f32.mrf.mxu0
    %v381 = vadd.f32 %v311, %v380
    %v382 = vpop.f32.mrf.mxu0
    %v383 = vadd.f32 %v311, %v382
    %384 = vmatmul.bf16.gmra.mxu0 %v348
    %v385 = vpop.f32.mrf.mxu0
    %v386 = vadd.f32 %v311, %v385
    %v387 = vpop.f32.mrf.mxu0
    %v388 = vadd.f32 %v311, %v387
    %389 = vmatmul.bf16.gmra.mxu0 %v349
    %v390 = vpop.f32.mrf.mxu0
    %v391 = vadd.f32 %v311, %v390
    %v392 = vpop.f32.mrf.mxu0
    %v393 = vadd.f32 %v311, %v392
    %394 = vmatmul.bf16.gmra.mxu0 %v350
    %v395 = vpop.f32.mrf.mxu0
    %v396 = vadd.f32 %v311, %v395
    %v397 = vpop.f32.mrf.mxu0
    %v398 = vadd.f32 %v311, %v397
    %399 = vmatmul.bf16.gmra.mxu0 %v351
    %v400 = vpop.f32.mrf.mxu0
    %v401 = vadd.f32 %v311, %v400
    %v402 = vpop.f32.mrf.mxu0
    %v403 = vadd.f32 %v311, %v402
    %404 = vmatmul.bf16.gmra.mxu0 %v352
    %v405 = vpop.f32.mrf.mxu0
    %v406 = vadd.f32 %v311, %v405
    %v407 = vpop.f32.mrf.mxu0
    %v408 = vadd.f32 %v311, %v407
    %409 = vdwg.mxu0
    %v410 = vmax.f32 %v371, 0.0
    %v411 = vmax.f32 %v373, 0.0
    %v412 = vmax.f32 %v376, 0.0
    %v413 = vmax.f32 %v378, 0.0
    %v414 = vmax.f32 %v381, 0.0
    %v415 = vmax.f32 %v383, 0.0
    %v416 = vmax.f32 %v386, 0.0
    %v417 = vmax.f32 %v388, 0.0
    %v418 = vmax.f32 %v391, 0.0
    %v419 = vmax.f32 %v393, 0.0
    %v420 = vmax.f32 %v396, 0.0
    %v421 = vmax.f32 %v398, 0.0
    %v422 = vmax.f32 %v401, 0.0
    %v423 = vmax.f32 %v403, 0.0
    %v424 = vmax.f32 %v406, 0.0
    %v425 = vmax.f32 %v408, 0.0
    %v426 = vpack.c.bf16 %v411, %v410
    %v427 = vpack.c.bf16 %v413, %v412
    %v428 = vpack.c.bf16 %v415, %v414
    %v429 = vpack.c.bf16 %v417, %v416
    %v430 = vpack.c.bf16 %v419, %v418
    %v431 = vpack.c.bf16 %v421, %v420
    %v432 = vpack.c.bf16 %v423, %v422
    %v433 = vpack.c.bf16 %v425, %v424
    %v434 = vld [vmem:[#allocation8] sm:$0xf]
    %v435 = vld [vmem:[#allocation8 + $0x4] sm:$0xf]
    %v436 = vld [vmem:[#allocation8 + $0x8] sm:$0xf]
    %v437 = vld [vmem:[#allocation8 + $0xc] sm:$0xf]
    %v438 = vld [vmem:[#allocation8 + $0x10] sm:$0xf]
    %v439 = vld [vmem:[#allocation8 + $0x14] sm:$0xf]
    %v440 = vld [vmem:[#allocation8 + $0x18] sm:$0xf]
    %v441 = vld [vmem:[#allocation8 + $0x1c] sm:$0xf]
    %v442 = vld [vmem:[#allocation8 + $0x20] sm:$0xf]
    %v443 = vld [vmem:[#allocation8 + $0x24] sm:$0xf]
    %v444 = vld [vmem:[#allocation8 + $0x28] sm:$0xf]
    %v445 = vld [vmem:[#allocation8 + $0x2c] sm:$0xf]
    %v446 = vld [vmem:[#allocation8 + $0x30] sm:$0xf]
    %v447 = vld [vmem:[#allocation8 + $0x34] sm:$0xf]
    %v448 = vld [vmem:[#allocation8 + $0x38] sm:$0xf]
    %v449 = vld [vmem:[#allocation8 + $0x3c] sm:$0xf]
    %v466 = vunpack.c.l.b16 %v434
    %v467 = vunpack.c.l.b16 %v435
    %v468 = vunpack.c.l.b16 %v436
    %v469 = vunpack.c.l.b16 %v437
    %v470 = vunpack.c.l.b16 %v438
    %v471 = vunpack.c.l.b16 %v439
    %v472 = vunpack.c.l.b16 %v440
    %v473 = vunpack.c.l.b16 %v441
    %v474 = vunpack.c.l.b16 %v442
    %v475 = vunpack.c.l.b16 %v443
    %v476 = vunpack.c.l.b16 %v444
    %v477 = vunpack.c.l.b16 %v445
    %v478 = vunpack.c.l.b16 %v446
    %v479 = vunpack.c.l.b16 %v447
    %v480 = vunpack.c.l.b16 %v448
    %v481 = vunpack.c.l.b16 %v449
    %v482 = vpack.c.b16 %v467, %v466
    %v483 = vpack.c.b16 %v469, %v468
    %v484 = vpack.c.b16 %v471, %v470
    %v485 = vpack.c.b16 %v473, %v472
    %v486 = vpack.c.b16 %v475, %v474
    %v487 = vpack.c.b16 %v477, %v476
    %v488 = vpack.c.b16 %v479, %v478
    %v489 = vpack.c.b16 %v481, %v480
    %498 = vmatpush.bf16.msra.mxu0 %v489
    %499 = vmatpush.bf16.msra.mxu0 %v488
    %500 = vmatpush.bf16.msra.mxu0 %v487
    %501 = vmatpush.bf16.msra.mxu0 %v486
    %502 = vmatpush.bf16.msra.mxu0 %v485
    %503 = vmatpush.bf16.msra.mxu0 %v484
    %504 = vmatpush.bf16.msra.mxu0 %v483
    %505 = vmatpush.bf16.msra.mxu0 %v482
    %506 = vmatmul.bf16.gmra.mxu0 %v426
    %v507 = vpop.f32.mrf.mxu0
    %v508 = vadd.f32 0.0, %v507
    %v509 = vpop.f32.mrf.mxu0
    %v510 = vadd.f32 0.0, %v509
    %511 = vmatmul.bf16.gmra.mxu0 %v427
    %v512 = vpop.f32.mrf.mxu0
    %v513 = vadd.f32 0.0, %v512
    %v514 = vpop.f32.mrf.mxu0
    %v515 = vadd.f32 0.0, %v514
    %516 = vmatmul.bf16.gmra.mxu0 %v428
    %v517 = vpop.f32.mrf.mxu0
    %v518 = vadd.f32 0.0, %v517
    %v519 = vpop.f32.mrf.mxu0
    %v520 = vadd.f32 0.0, %v519
    %521 = vmatmul.bf16.gmra.mxu0 %v429
    %v522 = vpop.f32.mrf.mxu0
    %v523 = vadd.f32 0.0, %v522
    %v524 = vpop.f32.mrf.mxu0
    %v525 = vadd.f32 0.0, %v524
    %526 = vmatmul.bf16.gmra.mxu0 %v430
    %v527 = vpop.f32.mrf.mxu0
    %v528 = vadd.f32 0.0, %v527
    %v529 = vpop.f32.mrf.mxu0
    %v530 = vadd.f32 0.0, %v529
    %531 = vmatmul.bf16.gmra.mxu0 %v431
    %v532 = vpop.f32.mrf.mxu0
    %v533 = vadd.f32 0.0, %v532
    %v534 = vpop.f32.mrf.mxu0
    %v535 = vadd.f32 0.0, %v534
    %536 = vmatmul.bf16.gmra.mxu0 %v432
    %v537 = vpop.f32.mrf.mxu0
    %v538 = vadd.f32 0.0, %v537
    %v539 = vpop.f32.mrf.mxu0
    %v540 = vadd.f32 0.0, %v539
    %541 = vmatmul.bf16.gmra.mxu0 %v433
    %v542 = vpop.f32.mrf.mxu0
    %v543 = vadd.f32 0.0, %v542
    %v544 = vpop.f32.mrf.mxu0
    %v545 = vadd.f32 0.0, %v544
    %546 = vdwg.mxu0
    %v547 = vpack.c.bf16 %v510, %v508
    %v548 = vpack.c.bf16 %v515, %v513
    %v549 = vpack.c.bf16 %v520, %v518
    %v550 = vpack.c.bf16 %v525, %v523
    %v551 = vpack.c.bf16 %v530, %v528
    %v552 = vpack.c.bf16 %v535, %v533
    %v553 = vpack.c.bf16 %v540, %v538
    %v554 = vpack.c.bf16 %v545, %v543
    %v555 = vld [vmem:[%s6] sm:$0x1]
    %v557 = vperm.slane %v555, 0
    %559 = vmatpush.bf16.msra.mxu0 %v554
    %560 = vmatpush.bf16.msra.mxu0 %v553
    %561 = vmatpush.bf16.msra.mxu0 %v552
    %562 = vmatpush.bf16.msra.mxu0 %v551
    %563 = vmatpush.bf16.msra.mxu0 %v550
    %564 = vmatpush.bf16.msra.mxu0 %v549
    %565 = vmatpush.bf16.msra.mxu0 %v548
    %566 = vmatpush.bf16.msra.mxu0 %v547
    %567 = vmatmul.bf16.gmra.mxu0 %v345
    %v568 = vpop.f32.mrf.mxu0
    %v569 = vadd.f32 %v557, %v568
    %v570 = vpop.f32.mrf.mxu0
    %v571 = vadd.f32 %v557, %v570
    %572 = vmatmul.bf16.gmra.mxu0 %v346
    %v573 = vpop.f32.mrf.mxu0
    %v574 = vadd.f32 %v557, %v573
    %v575 = vpop.f32.mrf.mxu0
    %v576 = vadd.f32 %v557, %v575
    %577 = vmatmul.bf16.gmra.mxu0 %v347
    %v578 = vpop.f32.mrf.mxu0
    %v579 = vadd.f32 %v557, %v578
    %v580 = vpop.f32.mrf.mxu0
    %v581 = vadd.f32 %v557, %v580
    %582 = vmatmul.bf16.gmra.mxu0 %v348
    %v583 = vpop.f32.mrf.mxu0
    %v584 = vadd.f32 %v557, %v583
    %v585 = vpop.f32.mrf.mxu0
    %v586 = vadd.f32 %v557, %v585
    %587 = vmatmul.bf16.gmra.mxu0 %v349
    %v588 = vpop.f32.mrf.mxu0
    %v589 = vadd.f32 %v557, %v588
    %v590 = vpop.f32.mrf.mxu0
    %v591 = vadd.f32 %v557, %v590
    %592 = vmatmul.bf16.gmra.mxu0 %v350
    %v593 = vpop.f32.mrf.mxu0
    %v594 = vadd.f32 %v557, %v593
    %v595 = vpop.f32.mrf.mxu0
    %v596 = vadd.f32 %v557, %v595
    %597 = vmatmul.bf16.gmra.mxu0 %v351
    %v598 = vpop.f32.mrf.mxu0
    %v599 = vadd.f32 %v557, %v598
    %v600 = vpop.f32.mrf.mxu0
    %v601 = vadd.f32 %v557, %v600
    %602 = vmatmul.bf16.gmra.mxu0 %v352
    %v603 = vpop.f32.mrf.mxu0
    %v604 = vadd.f32 %v557, %v603
    %v605 = vpop.f32.mrf.mxu0
    %v606 = vadd.f32 %v557, %v605
    %607 = vdwg.mxu0
    %v608 = vmax.f32 %v569, 0.0
    %v609 = vmax.f32 %v571, 0.0
    %v610 = vmax.f32 %v574, 0.0
    %v611 = vmax.f32 %v576, 0.0
    %v612 = vmax.f32 %v579, 0.0
    %v613 = vmax.f32 %v581, 0.0
    %v614 = vmax.f32 %v584, 0.0
    %v615 = vmax.f32 %v586, 0.0
    %v616 = vmax.f32 %v589, 0.0
    %v617 = vmax.f32 %v591, 0.0
    %v618 = vmax.f32 %v594, 0.0
    %v619 = vmax.f32 %v596, 0.0
    %v620 = vmax.f32 %v599, 0.0
    %v621 = vmax.f32 %v601, 0.0
    %v622 = vmax.f32 %v604, 0.0
    %v623 = vmax.f32 %v606, 0.0
    %v624 = vpack.c.bf16 %v609, %v608
    %v625 = vpack.c.bf16 %v611, %v610
    %v626 = vpack.c.bf16 %v613, %v612
    %v627 = vpack.c.bf16 %v615, %v614
    %v628 = vpack.c.bf16 %v617, %v616
    %v629 = vpack.c.bf16 %v619, %v618
    %v630 = vpack.c.bf16 %v621, %v620
    %v631 = vpack.c.bf16 %v623, %v622
    %v632 = vld [vmem:[#allocation10] sm:$0xf]
    %v633 = vld [vmem:[#allocation10 + $0x4] sm:$0xf]
    %v634 = vld [vmem:[#allocation10 + $0x8] sm:$0xf]
    %v635 = vld [vmem:[#allocation10 + $0xc] sm:$0xf]
    %v636 = vld [vmem:[#allocation10 + $0x10] sm:$0xf]
    %v637 = vld [vmem:[#allocation10 + $0x14] sm:$0xf]
    %v638 = vld [vmem:[#allocation10 + $0x18] sm:$0xf]
    %v639 = vld [vmem:[#allocation10 + $0x1c] sm:$0xf]
    %v640 = vld [vmem:[#allocation10 + $0x20] sm:$0xf]
    %v641 = vld [vmem:[#allocation10 + $0x24] sm:$0xf]
    %v642 = vld [vmem:[#allocation10 + $0x28] sm:$0xf]
    %v643 = vld [vmem:[#allocation10 + $0x2c] sm:$0xf]
    %v644 = vld [vmem:[#allocation10 + $0x30] sm:$0xf]
    %v645 = vld [vmem:[#allocation10 + $0x34] sm:$0xf]
    %v646 = vld [vmem:[#allocation10 + $0x38] sm:$0xf]
    %v647 = vld [vmem:[#allocation10 + $0x3c] sm:$0xf]
    %v664 = vunpack.c.l.b16 %v632
    %v665 = vunpack.c.l.b16 %v633
    %v666 = vunpack.c.l.b16 %v634
    %v667 = vunpack.c.l.b16 %v635
    %v668 = vunpack.c.l.b16 %v636
    %v669 = vunpack.c.l.b16 %v637
    %v670 = vunpack.c.l.b16 %v638
    %v671 = vunpack.c.l.b16 %v639
    %v672 = vunpack.c.l.b16 %v640
    %v673 = vunpack.c.l.b16 %v641
    %v674 = vunpack.c.l.b16 %v642
    %v675 = vunpack.c.l.b16 %v643
    %v676 = vunpack.c.l.b16 %v644
    %v677 = vunpack.c.l.b16 %v645
    %v678 = vunpack.c.l.b16 %v646
    %v679 = vunpack.c.l.b16 %v647
    %v680 = vpack.c.b16 %v665, %v664
    %v681 = vpack.c.b16 %v667, %v666
    %v682 = vpack.c.b16 %v669, %v668
    %v683 = vpack.c.b16 %v671, %v670
    %v684 = vpack.c.b16 %v673, %v672
    %v685 = vpack.c.b16 %v675, %v674
    %v686 = vpack.c.b16 %v677, %v676
    %v687 = vpack.c.b16 %v679, %v678
    %696 = vmatpush.bf16.msra.mxu0 %v687
    %697 = vmatpush.bf16.msra.mxu0 %v686
    %698 = vmatpush.bf16.msra.mxu0 %v685
    %699 = vmatpush.bf16.msra.mxu0 %v684
    %700 = vmatpush.bf16.msra.mxu0 %v683
    %701 = vmatpush.bf16.msra.mxu0 %v682
    %702 = vmatpush.bf16.msra.mxu0 %v681
    %703 = vmatpush.bf16.msra.mxu0 %v680
    %704 = vmatmul.bf16.gmra.mxu0 %v624
    %v705 = vpop.f32.mrf.mxu0
    %v706 = vadd.f32 0.0, %v705
    %v707 = vpop.f32.mrf.mxu0
    %v708 = vadd.f32 0.0, %v707
    %709 = vmatmul.bf16.gmra.mxu0 %v625
    %v710 = vpop.f32.mrf.mxu0
    %v711 = vadd.f32 0.0, %v710
    %v712 = vpop.f32.mrf.mxu0
    %v713 = vadd.f32 0.0, %v712
    %714 = vmatmul.bf16.gmra.mxu0 %v626
    %v715 = vpop.f32.mrf.mxu0
    %v716 = vadd.f32 0.0, %v715
    %v717 = vpop.f32.mrf.mxu0
    %v718 = vadd.f32 0.0, %v717
    %719 = vmatmul.bf16.gmra.mxu0 %v627
    %v720 = vpop.f32.mrf.mxu0
    %v721 = vadd.f32 0.0, %v720
    %v722 = vpop.f32.mrf.mxu0
    %v723 = vadd.f32 0.0, %v722
    %724 = vmatmul.bf16.gmra.mxu0 %v628
    %v725 = vpop.f32.mrf.mxu0
    %v726 = vadd.f32 0.0, %v725
    %v727 = vpop.f32.mrf.mxu0
    %v728 = vadd.f32 0.0, %v727
    %729 = vmatmul.bf16.gmra.mxu0 %v629
    %v730 = vpop.f32.mrf.mxu0
    %v731 = vadd.f32 0.0, %v730
    %v732 = vpop.f32.mrf.mxu0
    %v733 = vadd.f32 0.0, %v732
    %734 = vmatmul.bf16.gmra.mxu0 %v630
    %v735 = vpop.f32.mrf.mxu0
    %v736 = vadd.f32 0.0, %v735
    %v737 = vpop.f32.mrf.mxu0
    %v738 = vadd.f32 0.0, %v737
    %739 = vmatmul.bf16.gmra.mxu0 %v631
    %v740 = vpop.f32.mrf.mxu0
    %v741 = vadd.f32 0.0, %v740
    %v742 = vpop.f32.mrf.mxu0
    %v743 = vadd.f32 0.0, %v742
    %744 = vdwg.mxu0
    %v745 = vpack.c.bf16 %v708, %v706
    %v746 = vpack.c.bf16 %v713, %v711
    %v747 = vpack.c.bf16 %v718, %v716
    %v748 = vpack.c.bf16 %v723, %v721
    %v749 = vpack.c.bf16 %v728, %v726
    %v750 = vpack.c.bf16 %v733, %v731
    %v751 = vpack.c.bf16 %v738, %v736
    %v752 = vpack.c.bf16 %v743, %v741
    %v753 = vld [vmem:[%s7] sm:$0x1]
    %v755 = vperm.slane %v753, 0
    %757 = vmatpush.bf16.msra.mxu0 %v752
    %758 = vmatpush.bf16.msra.mxu0 %v751
    %759 = vmatpush.bf16.msra.mxu0 %v750
    %760 = vmatpush.bf16.msra.mxu0 %v749
    %761 = vmatpush.bf16.msra.mxu0 %v748
    %762 = vmatpush.bf16.msra.mxu0 %v747
    %763 = vmatpush.bf16.msra.mxu0 %v746
    %764 = vmatpush.bf16.msra.mxu0 %v745
    %765 = vmatmul.bf16.gmra.mxu0 %v345
    %v766 = vpop.f32.mrf.mxu0
    %v767 = vadd.f32 %v755, %v766
    %v768 = vpop.f32.mrf.mxu0
    %v769 = vadd.f32 %v755, %v768
    %770 = vmatmul.bf16.gmra.mxu0 %v346
    %v771 = vpop.f32.mrf.mxu0
    %v772 = vadd.f32 %v755, %v771
    %v773 = vpop.f32.mrf.mxu0
    %v774 = vadd.f32 %v755, %v773
    %775 = vmatmul.bf16.gmra.mxu0 %v347
    %v776 = vpop.f32.mrf.mxu0
    %v777 = vadd.f32 %v755, %v776
    %v778 = vpop.f32.mrf.mxu0
    %v779 = vadd.f32 %v755, %v778
    %780 = vmatmul.bf16.gmra.mxu0 %v348
    %v781 = vpop.f32.mrf.mxu0
    %v782 = vadd.f32 %v755, %v781
    %v783 = vpop.f32.mrf.mxu0
    %v784 = vadd.f32 %v755, %v783
    %785 = vmatmul.bf16.gmra.mxu0 %v349
    %v786 = vpop.f32.mrf.mxu0
    %v787 = vadd.f32 %v755, %v786
    %v788 = vpop.f32.mrf.mxu0
    %v789 = vadd.f32 %v755, %v788
    %790 = vmatmul.bf16.gmra.mxu0 %v350
    %v791 = vpop.f32.mrf.mxu0
    %v792 = vadd.f32 %v755, %v791
    %v793 = vpop.f32.mrf.mxu0
    %v794 = vadd.f32 %v755, %v793
    %795 = vmatmul.bf16.gmra.mxu0 %v351
    %v796 = vpop.f32.mrf.mxu0
    %v797 = vadd.f32 %v755, %v796
    %v798 = vpop.f32.mrf.mxu0
    %v799 = vadd.f32 %v755, %v798
    %800 = vmatmul.bf16.gmra.mxu0 %v352
    %v801 = vpop.f32.mrf.mxu0
    %v802 = vadd.f32 %v755, %v801
    %v803 = vpop.f32.mrf.mxu0
    %v804 = vadd.f32 %v755, %v803
    %805 = vdwg.mxu0
    %v806 = vlaneseq
    %v807 = vand.u32 %v806, 127
    %vm808 = vcmp.lt.s32.totalorder %v807, 2
    %v809 = vsel %vm808, %v767, -1e+30
    %v810 = vsel %vm808, %v769, -1e+30
    %v811 = vsel %vm808, %v772, -1e+30
    %v812 = vsel %vm808, %v774, -1e+30
    %v813 = vsel %vm808, %v777, -1e+30
    %v814 = vsel %vm808, %v779, -1e+30
    %v815 = vsel %vm808, %v782, -1e+30
    %v816 = vsel %vm808, %v784, -1e+30
    %v817 = vsel %vm808, %v787, -1e+30
    %v818 = vsel %vm808, %v789, -1e+30
    %v819 = vsel %vm808, %v792, -1e+30
    %v820 = vsel %vm808, %v794, -1e+30
    %v821 = vsel %vm808, %v797, -1e+30
    %v822 = vsel %vm808, %v799, -1e+30
    %v823 = vsel %vm808, %v802, -1e+30
    %v824 = vsel %vm808, %v804, -1e+30
    %825 = vmax.xlane.f32.xlu0 %v809
    %v826 = vpop.xlane.xlu0 %825
    %827 = vmax.xlane.f32.xlu0 %v810
    %v828 = vpop.xlane.xlu0 %827
    %829 = vmax.xlane.f32.xlu0 %v811
    %v830 = vpop.xlane.xlu0 %829
    %831 = vmax.xlane.f32.xlu0 %v812
    %v832 = vpop.xlane.xlu0 %831
    %833 = vmax.xlane.f32.xlu0 %v813
    %v834 = vpop.xlane.xlu0 %833
    %835 = vmax.xlane.f32.xlu0 %v814
    %v836 = vpop.xlane.xlu0 %835
    %837 = vmax.xlane.f32.xlu0 %v815
    %v838 = vpop.xlane.xlu0 %837
    %839 = vmax.xlane.f32.xlu0 %v816
    %v840 = vpop.xlane.xlu0 %839
    %841 = vmax.xlane.f32.xlu0 %v817
    %v842 = vpop.xlane.xlu0 %841
    %843 = vmax.xlane.f32.xlu0 %v818
    %v844 = vpop.xlane.xlu0 %843
    %845 = vmax.xlane.f32.xlu0 %v819
    %v846 = vpop.xlane.xlu0 %845
    %847 = vmax.xlane.f32.xlu0 %v820
    %v848 = vpop.xlane.xlu0 %847
    %849 = vmax.xlane.f32.xlu0 %v821
    %v850 = vpop.xlane.xlu0 %849
    %851 = vmax.xlane.f32.xlu0 %v822
    %v852 = vpop.xlane.xlu0 %851
    %853 = vmax.xlane.f32.xlu0 %v823
    %v854 = vpop.xlane.xlu0 %853
    %855 = vmax.xlane.f32.xlu0 %v824
    %v856 = vpop.xlane.xlu0 %855
    %v857 = vsub.f32 %v809, %v826
    %v858 = vsub.f32 %v810, %v828
    %v859 = vsub.f32 %v811, %v830
    %v860 = vsub.f32 %v812, %v832
    %v861 = vsub.f32 %v813, %v834
    %v862 = vsub.f32 %v814, %v836
    %v863 = vsub.f32 %v815, %v838
    %v864 = vsub.f32 %v816, %v840
    %v865 = vsub.f32 %v817, %v842
    %v866 = vsub.f32 %v818, %v844
    %v867 = vsub.f32 %v819, %v846
    %v868 = vsub.f32 %v820, %v848
    %v869 = vsub.f32 %v821, %v850
    %v870 = vsub.f32 %v822, %v852
    %v871 = vsub.f32 %v823, %v854
    %v872 = vsub.f32 %v824, %v856
    %v873 = vmul.f32 %v857, 1.442695
    %v874 = vpow.pop %v873
    %v875 = vmul.f32 %v858, 1.442695
    %v876 = vpow.pop %v875
    %v877 = vmul.f32 %v859, 1.442695
    %v878 = vpow.pop %v877
    %v879 = vmul.f32 %v860, 1.442695
    %v880 = vpow.pop %v879
    %v881 = vmul.f32 %v861, 1.442695
    %v882 = vpow.pop %v881
    %v883 = vmul.f32 %v862, 1.442695
    %v884 = vpow.pop %v883
    %v885 = vmul.f32 %v863, 1.442695
    %v886 = vpow.pop %v885
    %v887 = vmul.f32 %v864, 1.442695
    %v888 = vpow.pop %v887
    %v889 = vmul.f32 %v865, 1.442695
    %v890 = vpow.pop %v889
    %v891 = vmul.f32 %v866, 1.442695
    %v892 = vpow.pop %v891
    %v893 = vmul.f32 %v867, 1.442695
    %v894 = vpow.pop %v893
    %v895 = vmul.f32 %v868, 1.442695
    %v896 = vpow.pop %v895
    %v897 = vmul.f32 %v869, 1.442695
    %v898 = vpow.pop %v897
    %v899 = vmul.f32 %v870, 1.442695
    %v900 = vpow.pop %v899
    %v901 = vmul.f32 %v871, 1.442695
    %v902 = vpow.pop %v901
    %v903 = vmul.f32 %v872, 1.442695
    %v904 = vpow.pop %v903
    %905 = vadd.xlane.f32.xlu0 %v874
    %v906 = vpop.xlane.xlu0 %905
    %907 = vadd.xlane.f32.xlu0 %v876
    %v908 = vpop.xlane.xlu0 %907
    %909 = vadd.xlane.f32.xlu0 %v878
    %v910 = vpop.xlane.xlu0 %909
    %911 = vadd.xlane.f32.xlu0 %v880
    %v912 = vpop.xlane.xlu0 %911
    %913 = vadd.xlane.f32.xlu0 %v882
    %v914 = vpop.xlane.xlu0 %913
    %915 = vadd.xlane.f32.xlu0 %v884
    %v916 = vpop.xlane.xlu0 %915
    %917 = vadd.xlane.f32.xlu0 %v886
    %v918 = vpop.xlane.xlu0 %917
    %919 = vadd.xlane.f32.xlu0 %v888
    %v920 = vpop.xlane.xlu0 %919
    %921 = vadd.xlane.f32.xlu0 %v890
    %v922 = vpop.xlane.xlu0 %921
    %923 = vadd.xlane.f32.xlu0 %v892
    %v924 = vpop.xlane.xlu0 %923
    %925 = vadd.xlane.f32.xlu0 %v894
    %v926 = vpop.xlane.xlu0 %925
    %927 = vadd.xlane.f32.xlu0 %v896
    %v928 = vpop.xlane.xlu0 %927
    %929 = vadd.xlane.f32.xlu0 %v898
    %v930 = vpop.xlane.xlu0 %929
    %931 = vadd.xlane.f32.xlu0 %v900
    %v932 = vpop.xlane.xlu0 %931
    %933 = vadd.xlane.f32.xlu0 %v902
    %v934 = vpop.xlane.xlu0 %933
    %935 = vadd.xlane.f32.xlu0 %v904
    %v936 = vpop.xlane.xlu0 %935
    %v937 = vlog2.pop %v906
    %v938 = vmul.f32 %v937, 0.6931472
    %v939 = vlog2.pop %v908
    %v940 = vmul.f32 %v939, 0.6931472
    %v941 = vlog2.pop %v910
    %v942 = vmul.f32 %v941, 0.6931472
    %v943 = vlog2.pop %v912
    %v944 = vmul.f32 %v943, 0.6931472
    %v945 = vlog2.pop %v914
    %v946 = vmul.f32 %v945, 0.6931472
    %v947 = vlog2.pop %v916
    %v948 = vmul.f32 %v947, 0.6931472
    %v949 = vlog2.pop %v918
    %v950 = vmul.f32 %v949, 0.6931472
    %v951 = vlog2.pop %v920
    %v952 = vmul.f32 %v951, 0.6931472
    %v953 = vlog2.pop %v922
    %v954 = vmul.f32 %v953, 0.6931472
    %v955 = vlog2.pop %v924
    %v956 = vmul.f32 %v955, 0.6931472
    %v957 = vlog2.pop %v926
    %v958 = vmul.f32 %v957, 0.6931472
    %v959 = vlog2.pop %v928
    %v960 = vmul.f32 %v959, 0.6931472
    %v961 = vlog2.pop %v930
    %v962 = vmul.f32 %v961, 0.6931472
    %v963 = vlog2.pop %v932
    %v964 = vmul.f32 %v963, 0.6931472
    %v965 = vlog2.pop %v934
    %v966 = vmul.f32 %v965, 0.6931472
    %v967 = vlog2.pop %v936
    %v968 = vmul.f32 %v967, 0.6931472
    %v969 = vsub.f32 %v857, %v938
    %v970 = vsub.f32 %v858, %v940
    %v971 = vsub.f32 %v859, %v942
    %v972 = vsub.f32 %v860, %v944
    %v973 = vsub.f32 %v861, %v946
    %v974 = vsub.f32 %v862, %v948
    %v975 = vsub.f32 %v863, %v950
    %v976 = vsub.f32 %v864, %v952
    %v977 = vsub.f32 %v865, %v954
    %v978 = vsub.f32 %v866, %v956
    %v979 = vsub.f32 %v867, %v958
    %v980 = vsub.f32 %v868, %v960
    %v981 = vsub.f32 %v869, %v962
    %v982 = vsub.f32 %v870, %v964
    %v983 = vsub.f32 %v871, %v966
    %v984 = vsub.f32 %v872, %v968
    %985 = vst [vmem:[#allocation11] sm:$0xff] %v969
    %986 = vst [vmem:[#allocation11 + $0x8] sm:$0xff] %v970
    %987 = vst [vmem:[#allocation11 + $0x10] sm:$0xff] %v971
    %988 = vst [vmem:[#allocation11 + $0x18] sm:$0xff] %v972
    %989 = vst [vmem:[#allocation11 + $0x20] sm:$0xff] %v973
    %990 = vst [vmem:[#allocation11 + $0x28] sm:$0xff] %v974
    %991 = vst [vmem:[#allocation11 + $0x30] sm:$0xff] %v975
    %992 = vst [vmem:[#allocation11 + $0x38] sm:$0xff] %v976
    %993 = vst [vmem:[#allocation11 + $0x40] sm:$0xff] %v977
    %994 = vst [vmem:[#allocation11 + $0x48] sm:$0xff] %v978
    %995 = vst [vmem:[#allocation11 + $0x50] sm:$0xff] %v979
    %996 = vst [vmem:[#allocation11 + $0x58] sm:$0xff] %v980
    %997 = vst [vmem:[#allocation11 + $0x60] sm:$0xff] %v981
    %998 = vst [vmem:[#allocation11 + $0x68] sm:$0xff] %v982
    %999 = vst [vmem:[#allocation11 + $0x70] sm:$0xff] %v983
    %1000 = vst [vmem:[#allocation11 + $0x78] sm:$0xff] %v984
    // Predicated region
    $region54: #{tpu_custom_call.1} parent=1 // pred_check
      _
    $region55: #{tpu_custom_call.1} parent=1 // pred_check_branch
      %1002 = sbr.rel (0) target = $region57
    $region56: #{tpu_custom_call.1} parent=1 // pred_region
      %1004 = vsyncadd [#allocation4], 0
      %s1005 = sshll.u32 [#allocation11], 4
      %s1006 = int_to_ptr.vmem [resolvable:$true] %s1005
      %s1007 = sshll.u32 %s8, 4
      %s1008 = int_to_ptr.hbm [resolvable:$true] %s1007
      %1013 = dma.vmem_to_hbm [thread:$0]  %s1006, 2048, %s1008, [#allocation4], 128, 128, 8
    $region57: #{tpu_custom_call.1} parent=1 // pred_fallthru
      _
    // Predicated region
    $region58: #{tpu_custom_call.1} parent=1 // pred_check
      _
    $region59: #{tpu_custom_call.1} parent=1 // pred_check_branch
      %1015 = sbr.rel (0) target = $region61
    $region60: #{tpu_custom_call.1} parent=1 // pred_region
      %1017 = dma.done [#allocation4], 2048
    $region61: #{tpu_custom_call.1} parent=1 // pred_fallthru
      _
    %1018 = vsyncpa [#allocation3], 1
    %1019 = vsyncpa [#allocation6], 1
    %1020 = vsyncpa [#allocation9], 1
    %1021 = vsyncpa [#allocation4], 1

</llo_original>
